<compile_context>
chip_gen: v6e
topology: v6e:2x2x1
jax: 0.10.0
libtpu: 0.0.40
codegen_flags: <defaults>
</compile_context>

<pallas_src>
import functools

import jax
import jax.numpy as jnp
from jax.experimental import pallas as pl
from jax.experimental.pallas import tpu as pltpu


def _lora_kernel(b_ref, a_ref, w_ref, o_ref, *, scale):
    # b_ref: (tm, rank)        -- tile of B along in_features
    # a_ref: (num_j, rank, tn) -- all of A, VMEM-resident across the whole grid
    # w_ref / o_ref: (tm, tn)  -- tile of weights / output
    j = pl.program_id(1)
    a_tile = a_ref[j]                                              # (rank, tn)
    delta = jnp.dot(b_ref[...], a_tile, preferred_element_type=jnp.float32)
    o_ref[...] = (w_ref[...].astype(jnp.float32) + delta * scale).astype(o_ref.dtype)


def _pick_tile(dim, requested, align):
    """Largest legal tile: the full dim if it fits, else an `align` multiple."""
    if dim <= requested:
        return dim
    return max(align, (requested // align) * align)


def lora_forward(weights, A, B, scale, *, en=True, tm=512, tn=512,
                 vmem_limit_bytes=None):
    """weights + (B @ A).reshape(weights.shape) * scale.

    weights: any shape with in_features * out_features elements.
    A: (rank, out_features), B: (in_features, rank).
    """
    if not en:
        return weights

    rank, out_features = A.shape
    in_features, rank_b = B.shape
    assert rank_b == rank, "A/B rank mismatch"
    orig_shape = weights.shape

    M, N = in_features, out_features
    w2d = weights.reshape(M, N)

    tm = _pick_tile(M, tm, 8)     # sublane-aligned (or full dim)
    tn = _pick_tile(N, tn, 128)   # lane-aligned (or full dim) -> dense stores
    num_i = pl.cdiv(M, tm)
    num_j = pl.cdiv(N, tn)

    # Pre-slice A into per-j blocks; zero-pad the tail so in-kernel indexing is
    # always in bounds.  A is tiny (rank * N), so this is negligible traffic.
    n_pad = num_j * tn
    a_p = A if n_pad == N else jnp.pad(A, ((0, 0), (0, n_pad - N)))
    a_blocks = a_p.reshape(rank, num_j, tn).transpose(1, 0, 2)   # (num_j, rank, tn)

    w_bytes = jnp.dtype(weights.dtype).itemsize
    cost = pl.CostEstimate(
        flops=2 * M * N * rank,
        bytes_accessed=(2 * M * N * w_bytes
                        + M * rank * jnp.dtype(B.dtype).itemsize
                        + rank * N * jnp.dtype(A.dtype).itemsize),
        transcendentals=0,
    )

    compiler_kwargs = dict(dimension_semantics=("parallel", "parallel"))
    if vmem_limit_bytes is not None:
        compiler_kwargs["vmem_limit_bytes"] = vmem_limit_bytes

    kernel = functools.partial(_lora_kernel, scale=scale)

    out2d = pl.pallas_call(
        kernel,
        out_shape=jax.ShapeDtypeStruct((M, N), weights.dtype),
        grid_spec=pltpu.PrefetchScalarGridSpec(
            num_scalar_prefetch=0,
            grid=(num_i, num_j),
            in_specs=[
                pl.BlockSpec((tm, rank), lambda i, j: (i, 0)),             # B
                pl.BlockSpec((num_j, rank, tn), lambda i, j: (0, 0, 0)),   # A (resident)
                pl.BlockSpec((tm, tn), lambda i, j: (i, j)),               # weights
            ],
            out_specs=pl.BlockSpec((tm, tn), lambda i, j: (i, j)),
        ),
        compiler_params=pltpu.CompilerParams(**compiler_kwargs),
        cost_estimate=cost,
        input_output_aliases={2: 0},   # weights may be overwritten if donated
    )(B, a_blocks, w2d)

    return out2d.reshape(orig_shape)


if __name__ == "__main__":
    rank = 8
    alpha = 16.0
    scale = alpha / rank

    key = jax.random.PRNGKey(0)

    def make_inputs(k, in_features, out_features):
        kw, ka, kb = jax.random.split(k, 3)
        # The PyTorch module initializes A and B to zeros (delta trivially 0);
        # use deterministic random values so the matmul + add path is exercised.
        w = jax.random.normal(kw, (in_features, out_features), dtype=jnp.float32)
        a = jax.random.normal(ka, (rank, out_features), dtype=jnp.float32) * 0.02
        b = jax.random.normal(kb, (in_features, rank), dtype=jnp.float32) * 0.02
        return w, a, b

    k1, k2 = jax.random.split(key)

    # Case 1: tile-aligned shapes (tiles become the full dims here).
    weights, A, B = make_inputs(k1, 256, 512)
    out = jax.block_until_ready(lora_forward(weights, A, B, scale, en=True))
    ref = weights + (B @ A).reshape(weights.shape) * scale
    assert out.shape == weights.shape
    assert jnp.allclose(out, ref, atol=1e-5, rtol=1e-5), "mismatch vs reference (case 1)"

    # Case 2: awkward shapes -> cdiv grid with masked partial edge blocks.
    weights2, A2, B2 = make_inputs(k2, 520, 640)
    out2 = jax.block_until_ready(lora_forward(weights2, A2, B2, scale, en=True))
    ref2 = weights2 + (B2 @ A2).reshape(weights2.shape) * scale
    assert out2.shape == weights2.shape
    assert jnp.allclose(out2, ref2, atol=1e-5, rtol=1e-5), "mismatch vs reference (case 2)"

    # Disabled path returns weights unchanged.
    assert lora_forward(weights, A, B, scale, en=False) is weights

    print("KERNEL_OK")
</pallas_src>

<mosaic_0001>
module attributes {stable_mosaic.version = 11 : i64} {
  func.func @_lora_kernel(%arg0: i32, %arg1: i32, %arg2: memref<256x8xf32, #tpu.memory_space<vmem>>, %arg3: memref<1x8x512xf32, #tpu.memory_space<vmem>>, %arg4: memref<256x512xf32, #tpu.memory_space<vmem>>, %arg5: memref<256x512xf32, #tpu.memory_space<vmem>>) attributes {dimension_semantics = [#tpu.dimension_semantics<parallel>, #tpu.dimension_semantics<parallel>], iteration_bounds = array<i64: 1, 1>, scalar_prefetch = 0 : i64, scratch_operands = 0 : i64, tpu.core_type = #tpu.core_type<tc>, window_params = [{transform_indices = @transform_0, window_bounds = array<i64: 256, 8>}, {pipeline_mode = #tpu.pipeline_mode<synchronous>, transform_indices = @transform_1, window_bounds = array<i64: 1, 8, 512>}, {transform_indices = @transform_2, window_bounds = array<i64: 256, 512>}, {transform_indices = @transform_3, window_bounds = array<i64: 256, 512>}]} {
    %0 = arith.index_cast %arg1 : i32 to index
    %c0 = arith.constant 0 : index
    %c0_0 = arith.constant 0 : index
    %1 = vector.load %arg3[%0, %c0, %c0_0] : memref<1x8x512xf32, #tpu.memory_space<vmem>>, vector<1x8x512xf32>
    %2 = vector.shape_cast %1 : vector<1x8x512xf32> to vector<8x512xf32>
    %c0_1 = arith.constant 0 : index
    %c0_2 = arith.constant 0 : index
    %3 = vector.load %arg2[%c0_1, %c0_2] : memref<256x8xf32, #tpu.memory_space<vmem>>, vector<256x8xf32>
    %cst = arith.constant dense<0.000000e+00> : vector<256x512xf32>
    %4 = tpu.matmul %3, %2, %cst {dimension_numbers = #tpu.dot_dimension_numbers<[1], [0], [0], [1], [0, 0, 1, 1], [], []>} : vector<256x8xf32>, vector<8x512xf32>, vector<256x512xf32> -> vector<256x512xf32>
    %c0_3 = arith.constant 0 : index
    %c0_4 = arith.constant 0 : index
    %5 = vector.load %arg4[%c0_3, %c0_4] : memref<256x512xf32, #tpu.memory_space<vmem>>, vector<256x512xf32>
    %cst_5 = arith.constant 2.000000e+00 : f32
    %6 = vector.broadcast %cst_5 : f32 to vector<256x512xf32>
    %7 = arith.mulf %4, %6 : vector<256x512xf32>
    %8 = arith.addf %5, %7 : vector<256x512xf32>
    %c0_6 = arith.constant 0 : index
    %c0_7 = arith.constant 0 : index
    %9 = vector.load %arg5[%c0_6, %c0_7] : memref<256x512xf32, #tpu.memory_space<vmem>>, vector<256x512xf32>
    tpu.vector_store %arg5[%c0_6, %c0_7], %8 {strides = array<i32>} : memref<256x512xf32, #tpu.memory_space<vmem>>, vector<256x512xf32>,
    return
  }
  func.func @transform_0(%arg0: i32, %arg1: i32) -> (i32, i32) {
    %c0_i32 = arith.constant 0 : i32
    %c0_i32_0 = arith.constant 0 : i32
    return %arg0, %c0_i32 : i32, i32
  }
  func.func @transform_1(%arg0: i32, %arg1: i32) -> (i32, i32, i32) {
    %c0_i32 = arith.constant 0 : i32
    %c0_i32_0 = arith.constant 0 : i32
    %c0_i32_1 = arith.constant 0 : i32
    %c0_i32_2 = arith.constant 0 : i32
    return %c0_i32, %c0_i32_0, %c0_i32_1 : i32, i32, i32
  }
  func.func @transform_2(%arg0: i32, %arg1: i32) -> (i32, i32) {
    %c0_i32 = arith.constant 0 : i32
    return %arg0, %arg1 : i32, i32
  }
  func.func @transform_3(%arg0: i32, %arg1: i32) -> (i32, i32) {
    %c0_i32 = arith.constant 0 : i32
    return %arg0, %arg1 : i32, i32
  }
}

</mosaic_0001>

<llo_original>
// kernel: tpu_custom_call.1
$region0: #{tpu_custom_call.1}
  #allocation0 [shape = 'u32[]', space=smem, size = 0x4, offset = 0x4, fixed_abs, tag = 'smem constant byte address 0x4 - core index']
  #allocation1 [shape = 'u32[144,128]{1,0:T(1,128)}', space=vmem, size = 0x12000, scoped, tag = 'internal scratch']
  %s0 = inlined_call_operand.vmem [shape: f32[256,8], index: 0, kind: input, shape index: {}]
  %s1 = inlined_call_operand.vmem [shape: f32[1,8,512], index: 1, kind: input, shape index: {}]
  %s2 = inlined_call_operand.hbm [shape: f32[256,512], index: 2, kind: input, shape index: {}, may-alias: {2,3}]
  %s3 = inlined_call_operand.hbm [shape: f32[256,512], index: 3, kind: output, shape index: {}, may-alias: {2,3}]
  %s4 = sld [smem:[#allocation0]]
  $region26: #{tpu_custom_call.1} parent=0
    _
  %s6 = ssub.s32 1, %s4
  %s7 = scalar_select 0, %s6, %s4
  $region1: #{tpu_custom_call.1} parent=0
    #allocation2 [shape = 'u8[524288]{0}', space=vmem, size = 0x80000, scoped, tag = 'input window, operand 2, single buffered']
    #allocation3 [shape = 's32[1]{0}', space=sflag, size = 0x4, scoped, tag = 'scoped memory for tpu_custom_call.1']
    #allocation4 [shape = 's32[1]{0}', space=sflag, size = 0x4, scoped, tag = 'scoped memory for tpu_custom_call.1']
    #allocation5 [shape = 'u8[524288]{0}', space=vmem, size = 0x80000, scoped, tag = 'output window, operand 0, single buffered']
    %8 = vsyncpa [#allocation3], 0
    %9 = vsyncpa [#allocation4], 0
    // Predicated region
    $region2: #{tpu_custom_call.1} parent=1 // pred_check
      _
    $region3: #{tpu_custom_call.1} parent=1 // pred_check_branch
      %11 = sbr.rel (0) target = $region5
    $region4: #{tpu_custom_call.1} parent=1 // pred_region
      _
    $region5: #{tpu_custom_call.1} parent=1 // pred_fallthru
      _
    // Predicated region
    $region6: #{tpu_custom_call.1} parent=1 // pred_check
      _
    $region7: #{tpu_custom_call.1} parent=1 // pred_check_branch
      %13 = sbr.rel (0) target = $region9
    $region8: #{tpu_custom_call.1} parent=1 // pred_region
      _
    $region9: #{tpu_custom_call.1} parent=1 // pred_fallthru
      _
    // Predicated region
    $region10: #{tpu_custom_call.1} parent=1 // pred_check
      _
    $region11: #{tpu_custom_call.1} parent=1 // pred_check_branch
      %15 = sbr.rel (0) target = $region13
    $region12: #{tpu_custom_call.1} parent=1 // pred_region
      %s17 = ssub.s32 16384, 16384
      %18 = vsyncadd [#allocation3], %s17
      %s19 = sshll.u32 [#allocation2], 4
      %s20 = int_to_ptr.vmem [resolvable:$true] %s19
      %25 = dma.hbm_to_vmem [thread:$0]  %s2, 16384, %s20, [#allocation3], 512, 512, 32
    $region13: #{tpu_custom_call.1} parent=1 // pred_fallthru
      _
    // Predicated region
    $region14: #{tpu_custom_call.1} parent=1 // pred_check
      _
    $region15: #{tpu_custom_call.1} parent=1 // pred_check_branch
      %27 = sbr.rel (0) target = $region17
    $region16: #{tpu_custom_call.1} parent=1 // pred_region
      %28 = dma.done [#allocation3], 16384
    $region17: #{tpu_custom_call.1} parent=1 // pred_fallthru
      _
    %s29 = smul.u32 0, 4
    %s30 = smul.addr %s29, 8
    %s31 = scalar_lea.vmem %s1, %s30
    %v32 = vld [vmem:[%s31] sm:$0xff]
    %v33 = vld [vmem:[%s31 + $0x8] sm:$0xff]
    %v34 = vld [vmem:[%s31 + $0x10] sm:$0xff]
    %v35 = vld [vmem:[%s31 + $0x18] sm:$0xff]
    %v36 = vld [vmem:[%s0] sm:$0xff]
    %v37 = vld [vmem:[%s0 + $0x8] sm:$0xff]
    %v38 = vld [vmem:[%s0 + $0x10] sm:$0xff]
    %v39 = vld [vmem:[%s0 + $0x18] sm:$0xff]
    %v40 = vld [vmem:[%s0 + $0x20] sm:$0xff]
    %v41 = vld [vmem:[%s0 + $0x28] sm:$0xff]
    %v42 = vld [vmem:[%s0 + $0x30] sm:$0xff]
    %v43 = vld [vmem:[%s0 + $0x38] sm:$0xff]
    %v44 = vld [vmem:[%s0 + $0x40] sm:$0xff]
    %v45 = vld [vmem:[%s0 + $0x48] sm:$0xff]
    %v46 = vld [vmem:[%s0 + $0x50] sm:$0xff]
    %v47 = vld [vmem:[%s0 + $0x58] sm:$0xff]
    %v48 = vld [vmem:[%s0 + $0x60] sm:$0xff]
    %v49 = vld [vmem:[%s0 + $0x68] sm:$0xff]
    %v50 = vld [vmem:[%s0 + $0x70] sm:$0xff]
    %v51 = vld [vmem:[%s0 + $0x78] sm:$0xff]
    %v52 = vld [vmem:[%s0 + $0x80] sm:$0xff]
    %v53 = vld [vmem:[%s0 + $0x88] sm:$0xff]
    %v54 = vld [vmem:[%s0 + $0x90] sm:$0xff]
    %v55 = vld [vmem:[%s0 + $0x98] sm:$0xff]
    %v56 = vld [vmem:[%s0 + $0xa0] sm:$0xff]
    %v57 = vld [vmem:[%s0 + $0xa8] sm:$0xff]
    %v58 = vld [vmem:[%s0 + $0xb0] sm:$0xff]
    %v59 = vld [vmem:[%s0 + $0xb8] sm:$0xff]
    %v60 = vld [vmem:[%s0 + $0xc0] sm:$0xff]
    %v61 = vld [vmem:[%s0 + $0xc8] sm:$0xff]
    %v62 = vld [vmem:[%s0 + $0xd0] sm:$0xff]
    %v63 = vld [vmem:[%s0 + $0xd8] sm:$0xff]
    %v64 = vld [vmem:[%s0 + $0xe0] sm:$0xff]
    %v65 = vld [vmem:[%s0 + $0xe8] sm:$0xff]
    %v66 = vld [vmem:[%s0 + $0xf0] sm:$0xff]
    %v67 = vld [vmem:[%s0 + $0xf8] sm:$0xff]
    %vm68 = vcmask 64512
    %v70 = vsel %vm68, %v36, 0
    %v73 = vsel %vm68, %v37, 0
    %v76 = vsel %vm68, %v38, 0
    %v79 = vsel %vm68, %v39, 0
    %v82 = vsel %vm68, %v40, 0
    %v85 = vsel %vm68, %v41, 0
    %v88 = vsel %vm68, %v42, 0
    %v91 = vsel %vm68, %v43, 0
    %v94 = vsel %vm68, %v44, 0
    %v97 = vsel %vm68, %v45, 0
    %v100 = vsel %vm68, %v46, 0
    %v103 = vsel %vm68, %v47, 0
    %v106 = vsel %vm68, %v48, 0
    %v109 = vsel %vm68, %v49, 0
    %v112 = vsel %vm68, %v50, 0
    %v115 = vsel %vm68, %v51, 0
    %v118 = vsel %vm68, %v52, 0
    %v121 = vsel %vm68, %v53, 0
    %v124 = vsel %vm68, %v54, 0
    %v127 = vsel %vm68, %v55, 0
    %v130 = vsel %vm68, %v56, 0
    %v133 = vsel %vm68, %v57, 0
    %v136 = vsel %vm68, %v58, 0
    %v139 = vsel %vm68, %v59, 0
    %v142 = vsel %vm68, %v60, 0
    %v145 = vsel %vm68, %v61, 0
    %v148 = vsel %vm68, %v62, 0
    %v151 = vsel %vm68, %v63, 0
    %v154 = vsel %vm68, %v64, 0
    %v157 = vsel %vm68, %v65, 0
    %v160 = vsel %vm68, %v66, 0
    %v163 = vsel %vm68, %v67, 0
    %165 = vmatprep.subr.mxu0 0.0
    %166 = vmatpush1.msra.mxu0 0.0
    %167 = vmatprep.subr.mxu0 0.0
    %168 = vmatpush1.msra.mxu0 0.0
    %169 = vmatprep.subr.mxu0 0.0
    %170 = vmatpush1.msra.mxu0 0.0
    %171 = vmatprep.subr.mxu0 0.0
    %172 = vmatpush1.msra.mxu0 0.0
    %173 = vmatprep.subr.mxu0 0.0
    %174 = vmatpush1.msra.mxu0 0.0
    %175 = vmatprep.subr.mxu0 0.0
    %176 = vmatpush1.msra.mxu0 0.0
    %177 = vmatprep.subr.mxu0 0.0
    %178 = vmatpush1.msra.mxu0 0.0
    %179 = vmatprep.subr.mxu0 0.0
    %180 = vmatpush1.msra.mxu0 0.0
    %181 = vmatprep.subr.mxu0 0.0
    %182 = vmatpush1.msra.mxu0 0.0
    %183 = vmatprep.subr.mxu0 0.0
    %184 = vmatpush1.msra.mxu0 0.0
    %185 = vmatprep.subr.mxu0 0.0
    %186 = vmatpush1.msra.mxu0 0.0
    %187 = vmatprep.subr.mxu0 0.0
    %188 = vmatpush1.msra.mxu0 0.0
    %189 = vmatprep.subr.mxu0 0.0
    %190 = vmatpush1.msra.mxu0 0.0
    %191 = vmatprep.subr.mxu0 0.0
    %192 = vmatpush1.msra.mxu0 0.0
    %193 = vmatprep.subr.mxu0 0.0
    %194 = vmatpush1.msra.mxu0 0.0
    %195 = vmatprep.subr.mxu0 %v33
    %196 = vmatpush1.msra.mxu0 %v32
    %197 = vmatprep.subr.mxu0 0.0
    %198 = vmatpush2.msra.mxu0 0.0
    %199 = vmatprep.subr.mxu0 0.0
    %200 = vmatpush2.msra.mxu0 0.0
    %201 = vmatprep.subr.mxu0 0.0
    %202 = vmatpush2.msra.mxu0 0.0
    %203 = vmatprep.subr.mxu0 0.0
    %204 = vmatpush2.msra.mxu0 0.0
    %205 = vmatprep.subr.mxu0 0.0
    %206 = vmatpush2.msra.mxu0 0.0
    %207 = vmatprep.subr.mxu0 0.0
    %208 = vmatpush2.msra.mxu0 0.0
    %209 = vmatprep.subr.mxu0 0.0
    %210 = vmatpush2.msra.mxu0 0.0
    %211 = vmatprep.subr.mxu0 0.0
    %212 = vmatpush2.msra.mxu0 0.0
    %213 = vmatprep.subr.mxu0 0.0
    %214 = vmatpush2.msra.mxu0 0.0
    %215 = vmatprep.subr.mxu0 0.0
    %216 = vmatpush2.msra.mxu0 0.0
    %217 = vmatprep.subr.mxu0 0.0
    %218 = vmatpush2.msra.mxu0 0.0
    %219 = vmatprep.subr.mxu0 0.0
    %220 = vmatpush2.msra.mxu0 0.0
    %221 = vmatprep.subr.mxu0 0.0
    %222 = vmatpush2.msra.mxu0 0.0
    %223 = vmatprep.subr.mxu0 0.0
    %224 = vmatpush2.msra.mxu0 0.0
    %225 = vmatprep.subr.mxu0 0.0
    %226 = vmatpush2.msra.mxu0 0.0
    %227 = vmatprep.subr.mxu0 0.0
    %228 = vmatpush2.msra.mxu0 0.0
    %229 = vmatprep.mubr.f32.mxu0 0.0
    %230 = vmatmul.mubr.f32.gmra.mxu0 %v70
    %v231 = vpop.f32.mrf.mxu0
    %v232 = vadd.f32 0.0, %v231
    %v233 = vpop.f32.mrf.mxu0
    %v234 = vadd.f32 0.0, %v233
    %235 = vmatprep.mubr.f32.mxu0 0.0
    %236 = vmatmul.mubr.f32.gmra.mxu0 %v73
    %v237 = vpop.f32.mrf.mxu0
    %v238 = vadd.f32 0.0, %v237
    %v239 = vpop.f32.mrf.mxu0
    %v240 = vadd.f32 0.0, %v239
    %241 = vmatprep.mubr.f32.mxu0 0.0
    %242 = vmatmul.mubr.f32.gmra.mxu0 %v76
    %v243 = vpop.f32.mrf.mxu0
    %v244 = vadd.f32 0.0, %v243
    %v245 = vpop.f32.mrf.mxu0
    %v246 = vadd.f32 0.0, %v245
    %247 = vmatprep.mubr.f32.mxu0 0.0
    %248 = vmatmul.mubr.f32.gmra.mxu0 %v79
    %v249 = vpop.f32.mrf.mxu0
    %v250 = vadd.f32 0.0, %v249
    %v251 = vpop.f32.mrf.mxu0
    %v252 = vadd.f32 0.0, %v251
    %253 = vmatprep.mubr.f32.mxu0 0.0
    %254 = vmatmul.mubr.f32.gmra.mxu0 %v82
    %v255 = vpop.f32.mrf.mxu0
    %v256 = vadd.f32 0.0, %v255
    %v257 = vpop.f32.mrf.mxu0
    %v258 = vadd.f32 0.0, %v257
    %259 = vmatprep.mubr.f32.mxu0 0.0
    %260 = vmatmul.mubr.f32.gmra.mxu0 %v85
    %v261 = vpop.f32.mrf.mxu0
    %v262 = vadd.f32 0.0, %v261
    %v263 = vpop.f32.mrf.mxu0
    %v264 = vadd.f32 0.0, %v263
    %265 = vmatprep.mubr.f32.mxu0 0.0
    %266 = vmatmul.mubr.f32.gmra.mxu0 %v88
    %v267 = vpop.f32.mrf.mxu0
    %v268 = vadd.f32 0.0, %v267
    %v269 = vpop.f32.mrf.mxu0
    %v270 = vadd.f32 0.0, %v269
    %271 = vmatprep.mubr.f32.mxu0 0.0
    %272 = vmatmul.mubr.f32.gmra.mxu0 %v91
    %v273 = vpop.f32.mrf.mxu0
    %v274 = vadd.f32 0.0, %v273
    %v275 = vpop.f32.mrf.mxu0
    %v276 = vadd.f32 0.0, %v275
    %277 = vmatprep.mubr.f32.mxu0 0.0
    %278 = vmatmul.mubr.f32.gmra.mxu0 %v94
    %v279 = vpop.f32.mrf.mxu0
    %v280 = vadd.f32 0.0, %v279
    %v281 = vpop.f32.mrf.mxu0
    %v282 = vadd.f32 0.0, %v281
    %283 = vmatprep.mubr.f32.mxu0 0.0
    %284 = vmatmul.mubr.f32.gmra.mxu0 %v97
    %v285 = vpop.f32.mrf.mxu0
    %v286 = vadd.f32 0.0, %v285
    %v287 = vpop.f32.mrf.mxu0
    %v288 = vadd.f32 0.0, %v287
    %289 = vmatprep.mubr.f32.mxu0 0.0
    %290 = vmatmul.mubr.f32.gmra.mxu0 %v100
    %v291 = vpop.f32.mrf.mxu0
    %v292 = vadd.f32 0.0, %v291
    %v293 = vpop.f32.mrf.mxu0
    %v294 = vadd.f32 0.0, %v293
    %295 = vmatprep.mubr.f32.mxu0 0.0
    %296 = vmatmul.mubr.f32.gmra.mxu0 %v103
    %v297 = vpop.f32.mrf.mxu0
    %v298 = vadd.f32 0.0, %v297
    %v299 = vpop.f32.mrf.mxu0
    %v300 = vadd.f32 0.0, %v299
    %301 = vmatprep.mubr.f32.mxu0 0.0
    %302 = vmatmul.mubr.f32.gmra.mxu0 %v106
    %v303 = vpop.f32.mrf.mxu0
    %v304 = vadd.f32 0.0, %v303
    %v305 = vpop.f32.mrf.mxu0
    %v306 = vadd.f32 0.0, %v305
    %307 = vmatprep.mubr.f32.mxu0 0.0
    %308 = vmatmul.mubr.f32.gmra.mxu0 %v109
    %v309 = vpop.f32.mrf.mxu0
    %v310 = vadd.f32 0.0, %v309
    %v311 = vpop.f32.mrf.mxu0
    %v312 = vadd.f32 0.0, %v311
    %313 = vmatprep.mubr.f32.mxu0 0.0
    %314 = vmatmul.mubr.f32.gmra.mxu0 %v112
    %v315 = vpop.f32.mrf.mxu0
    %v316 = vadd.f32 0.0, %v315
    %v317 = vpop.f32.mrf.mxu0
    %v318 = vadd.f32 0.0, %v317
    %319 = vmatprep.mubr.f32.mxu0 0.0
    %320 = vmatmul.mubr.f32.gmra.mxu0 %v115
    %v321 = vpop.f32.mrf.mxu0
    %v322 = vadd.f32 0.0, %v321
    %v323 = vpop.f32.mrf.mxu0
    %v324 = vadd.f32 0.0, %v323
    %325 = vmatprep.mubr.f32.mxu0 0.0
    %326 = vmatmul.mubr.f32.gmra.mxu0 %v118
    %v327 = vpop.f32.mrf.mxu0
    %v328 = vadd.f32 0.0, %v327
    %v329 = vpop.f32.mrf.mxu0
    %v330 = vadd.f32 0.0, %v329
    %331 = vmatprep.mubr.f32.mxu0 0.0
    %332 = vmatmul.mubr.f32.gmra.mxu0 %v121
    %v333 = vpop.f32.mrf.mxu0
    %v334 = vadd.f32 0.0, %v333
    %v335 = vpop.f32.mrf.mxu0
    %v336 = vadd.f32 0.0, %v335
    %337 = vmatprep.mubr.f32.mxu0 0.0
    %338 = vmatmul.mubr.f32.gmra.mxu0 %v124
    %v339 = vpop.f32.mrf.mxu0
    %v340 = vadd.f32 0.0, %v339
    %v341 = vpop.f32.mrf.mxu0
    %v342 = vadd.f32 0.0, %v341
    %343 = vmatprep.mubr.f32.mxu0 0.0
    %344 = vmatmul.mubr.f32.gmra.mxu0 %v127
    %v345 = vpop.f32.mrf.mxu0
    %v346 = vadd.f32 0.0, %v345
    %v347 = vpop.f32.mrf.mxu0
    %v348 = vadd.f32 0.0, %v347
    %349 = vmatprep.mubr.f32.mxu0 0.0
    %350 = vmatmul.mubr.f32.gmra.mxu0 %v130
    %v351 = vpop.f32.mrf.mxu0
    %v352 = vadd.f32 0.0, %v351
    %v353 = vpop.f32.mrf.mxu0
    %v354 = vadd.f32 0.0, %v353
    %355 = vmatprep.mubr.f32.mxu0 0.0
    %356 = vmatmul.mubr.f32.gmra.mxu0 %v133
    %v357 = vpop.f32.mrf.mxu0
    %v358 = vadd.f32 0.0, %v357
    %v359 = vpop.f32.mrf.mxu0
    %v360 = vadd.f32 0.0, %v359
    %361 = vmatprep.mubr.f32.mxu0 0.0
    %362 = vmatmul.mubr.f32.gmra.mxu0 %v136
    %v363 = vpop.f32.mrf.mxu0
    %v364 = vadd.f32 0.0, %v363
    %v365 = vpop.f32.mrf.mxu0
    %v366 = vadd.f32 0.0, %v365
    %367 = vmatprep.mubr.f32.mxu0 0.0
    %368 = vmatmul.mubr.f32.gmra.mxu0 %v139
    %v369 = vpop.f32.mrf.mxu0
    %v370 = vadd.f32 0.0, %v369
    %v371 = vpop.f32.mrf.mxu0
    %v372 = vadd.f32 0.0, %v371
    %373 = vmatprep.mubr.f32.mxu0 0.0
    %374 = vmatmul.mubr.f32.gmra.mxu0 %v142
    %v375 = vpop.f32.mrf.mxu0
    %v376 = vadd.f32 0.0, %v375
    %v377 = vpop.f32.mrf.mxu0
    %v378 = vadd.f32 0.0, %v377
    %379 = vmatprep.mubr.f32.mxu0 0.0
    %380 = vmatmul.mubr.f32.gmra.mxu0 %v145
    %v381 = vpop.f32.mrf.mxu0
    %v382 = vadd.f32 0.0, %v381
    %v383 = vpop.f32.mrf.mxu0
    %v384 = vadd.f32 0.0, %v383
    %385 = vmatprep.mubr.f32.mxu0 0.0
    %386 = vmatmul.mubr.f32.gmra.mxu0 %v148
    %v387 = vpop.f32.mrf.mxu0
    %v388 = vadd.f32 0.0, %v387
    %v389 = vpop.f32.mrf.mxu0
    %v390 = vadd.f32 0.0, %v389
    %391 = vmatprep.mubr.f32.mxu0 0.0
    %392 = vmatmul.mubr.f32.gmra.mxu0 %v151
    %v393 = vpop.f32.mrf.mxu0
    %v394 = vadd.f32 0.0, %v393
    %v395 = vpop.f32.mrf.mxu0
    %v396 = vadd.f32 0.0, %v395
    %397 = vmatprep.mubr.f32.mxu0 0.0
    %398 = vmatmul.mubr.f32.gmra.mxu0 %v154
    %v399 = vpop.f32.mrf.mxu0
    %v400 = vadd.f32 0.0, %v399
    %v401 = vpop.f32.mrf.mxu0
    %v402 = vadd.f32 0.0, %v401
    %403 = vmatprep.mubr.f32.mxu0 0.0
    %404 = vmatmul.mubr.f32.gmra.mxu0 %v157
    %v405 = vpop.f32.mrf.mxu0
    %v406 = vadd.f32 0.0, %v405
    %v407 = vpop.f32.mrf.mxu0
    %v408 = vadd.f32 0.0, %v407
    %409 = vmatprep.mubr.f32.mxu0 0.0
    %410 = vmatmul.mubr.f32.gmra.mxu0 %v160
    %v411 = vpop.f32.mrf.mxu0
    %v412 = vadd.f32 0.0, %v411
    %v413 = vpop.f32.mrf.mxu0
    %v414 = vadd.f32 0.0, %v413
    %415 = vmatprep.mubr.f32.mxu0 0.0
    %416 = vmatmul.mubr.f32.gmra.mxu0 %v163
    %v417 = vpop.f32.mrf.mxu0
    %v418 = vadd.f32 0.0, %v417
    %v419 = vpop.f32.mrf.mxu0
    %v420 = vadd.f32 0.0, %v419
    %421 = vdwg.mxu0
    %422 = vmatprep.subr.mxu0 0.0
    %423 = vmatpush1.msra.mxu0 0.0
    %424 = vmatprep.subr.mxu0 0.0
    %425 = vmatpush1.msra.mxu0 0.0
    %426 = vmatprep.subr.mxu0 0.0
    %427 = vmatpush1.msra.mxu0 0.0
    %428 = vmatprep.subr.mxu0 0.0
    %429 = vmatpush1.msra.mxu0 0.0
    %430 = vmatprep.subr.mxu0 0.0
    %431 = vmatpush1.msra.mxu0 0.0
    %432 = vmatprep.subr.mxu0 0.0
    %433 = vmatpush1.msra.mxu0 0.0
    %434 = vmatprep.subr.mxu0 0.0
    %435 = vmatpush1.msra.mxu0 0.0
    %436 = vmatprep.subr.mxu0 0.0
    %437 = vmatpush1.msra.mxu0 0.0
    %438 = vmatprep.subr.mxu0 0.0
    %439 = vmatpush1.msra.mxu0 0.0
    %440 = vmatprep.subr.mxu0 0.0
    %441 = vmatpush1.msra.mxu0 0.0
    %442 = vmatprep.subr.mxu0 0.0
    %443 = vmatpush1.msra.mxu0 0.0
    %444 = vmatprep.subr.mxu0 0.0
    %445 = vmatpush1.msra.mxu0 0.0
    %446 = vmatprep.subr.mxu0 0.0
    %447 = vmatpush1.msra.mxu0 0.0
    %448 = vmatprep.subr.mxu0 0.0
    %449 = vmatpush1.msra.mxu0 0.0
    %450 = vmatprep.subr.mxu0 0.0
    %451 = vmatpush1.msra.mxu0 0.0
    %452 = vmatprep.subr.mxu0 %v35
    %453 = vmatpush1.msra.mxu0 %v34
    %454 = vmatprep.subr.mxu0 0.0
    %455 = vmatpush2.msra.mxu0 0.0
    %456 = vmatprep.subr.mxu0 0.0
    %457 = vmatpush2.msra.mxu0 0.0
    %458 = vmatprep.subr.mxu0 0.0
    %459 = vmatpush2.msra.mxu0 0.0
    %460 = vmatprep.subr.mxu0 0.0
    %461 = vmatpush2.msra.mxu0 0.0
    %462 = vmatprep.subr.mxu0 0.0
    %463 = vmatpush2.msra.mxu0 0.0
    %464 = vmatprep.subr.mxu0 0.0
    %465 = vmatpush2.msra.mxu0 0.0
    %466 = vmatprep.subr.mxu0 0.0
    %467 = vmatpush2.msra.mxu0 0.0
    %468 = vmatprep.subr.mxu0 0.0
    %469 = vmatpush2.msra.mxu0 0.0
    %470 = vmatprep.subr.mxu0 0.0
    %471 = vmatpush2.msra.mxu0 0.0
    %472 = vmatprep.subr.mxu0 0.0
    %473 = vmatpush2.msra.mxu0 0.0
    %474 = vmatprep.subr.mxu0 0.0
    %475 = vmatpush2.msra.mxu0 0.0
    %476 = vmatprep.subr.mxu0 0.0
    %477 = vmatpush2.msra.mxu0 0.0
    %478 = vmatprep.subr.mxu0 0.0
    %479 = vmatpush2.msra.mxu0 0.0
    %480 = vmatprep.subr.mxu0 0.0
    %481 = vmatpush2.msra.mxu0 0.0
    %482 = vmatprep.subr.mxu0 0.0
    %483 = vmatpush2.msra.mxu0 0.0
    %484 = vmatprep.subr.mxu0 0.0
    %485 = vmatpush2.msra.mxu0 0.0
    %486 = vmatprep.mubr.f32.mxu0 0.0
    %487 = vmatmul.mubr.f32.gmra.mxu0 %v70
    %v488 = vpop.f32.mrf.mxu0
    %v489 = vadd.f32 0.0, %v488
    %v490 = vpop.f32.mrf.mxu0
    %v491 = vadd.f32 0.0, %v490
    %492 = vmatprep.mubr.f32.mxu0 0.0
    %493 = vmatmul.mubr.f32.gmra.mxu0 %v73
    %v494 = vpop.f32.mrf.mxu0
    %v495 = vadd.f32 0.0, %v494
    %v496 = vpop.f32.mrf.mxu0
    %v497 = vadd.f32 0.0, %v496
    %498 = vmatprep.mubr.f32.mxu0 0.0
    %499 = vmatmul.mubr.f32.gmra.mxu0 %v76
    %v500 = vpop.f32.mrf.mxu0
    %v501 = vadd.f32 0.0, %v500
    %v502 = vpop.f32.mrf.mxu0
    %v503 = vadd.f32 0.0, %v502
    %504 = vmatprep.mubr.f32.mxu0 0.0
    %505 = vmatmul.mubr.f32.gmra.mxu0 %v79
    %v506 = vpop.f32.mrf.mxu0
    %v507 = vadd.f32 0.0, %v506
    %v508 = vpop.f32.mrf.mxu0
    %v509 = vadd.f32 0.0, %v508
    %510 = vmatprep.mubr.f32.mxu0 0.0
    %511 = vmatmul.mubr.f32.gmra.mxu0 %v82
    %v512 = vpop.f32.mrf.mxu0
    %v513 = vadd.f32 0.0, %v512
    %v514 = vpop.f32.mrf.mxu0
    %v515 = vadd.f32 0.0, %v514
    %516 = vmatprep.mubr.f32.mxu0 0.0
    %517 = vmatmul.mubr.f32.gmra.mxu0 %v85
    %v518 = vpop.f32.mrf.mxu0
    %v519 = vadd.f32 0.0, %v518
    %v520 = vpop.f32.mrf.mxu0
    %v521 = vadd.f32 0.0, %v520
    %522 = vmatprep.mubr.f32.mxu0 0.0
    %523 = vmatmul.mubr.f32.gmra.mxu0 %v88
    %v524 = vpop.f32.mrf.mxu0
    %v525 = vadd.f32 0.0, %v524
    %v526 = vpop.f32.mrf.mxu0
    %v527 = vadd.f32 0.0, %v526
    %528 = vmatprep.mubr.f32.mxu0 0.0
    %529 = vmatmul.mubr.f32.gmra.mxu0 %v91
    %v530 = vpop.f32.mrf.mxu0
    %v531 = vadd.f32 0.0, %v530
    %v532 = vpop.f32.mrf.mxu0
    %v533 = vadd.f32 0.0, %v532
    %534 = vmatprep.mubr.f32.mxu0 0.0
    %535 = vmatmul.mubr.f32.gmra.mxu0 %v94
    %v536 = vpop.f32.mrf.mxu0
    %v537 = vadd.f32 0.0, %v536
    %v538 = vpop.f32.mrf.mxu0
    %v539 = vadd.f32 0.0, %v538
    %540 = vmatprep.mubr.f32.mxu0 0.0
    %541 = vmatmul.mubr.f32.gmra.mxu0 %v97
    %v542 = vpop.f32.mrf.mxu0
    %v543 = vadd.f32 0.0, %v542
    %v544 = vpop.f32.mrf.mxu0
    %v545 = vadd.f32 0.0, %v544
    %546 = vmatprep.mubr.f32.mxu0 0.0
    %547 = vmatmul.mubr.f32.gmra.mxu0 %v100
    %v548 = vpop.f32.mrf.mxu0
    %v549 = vadd.f32 0.0, %v548
    %v550 = vpop.f32.mrf.mxu0
    %v551 = vadd.f32 0.0, %v550
    %552 = vmatprep.mubr.f32.mxu0 0.0
    %553 = vmatmul.mubr.f32.gmra.mxu0 %v103
    %v554 = vpop.f32.mrf.mxu0
    %v555 = vadd.f32 0.0, %v554
    %v556 = vpop.f32.mrf.mxu0
    %v557 = vadd.f32 0.0, %v556
    %558 = vmatprep.mubr.f32.mxu0 0.0
    %559 = vmatmul.mubr.f32.gmra.mxu0 %v106
    %v560 = vpop.f32.mrf.mxu0
    %v561 = vadd.f32 0.0, %v560
    %v562 = vpop.f32.mrf.mxu0
    %v563 = vadd.f32 0.0, %v562
    %564 = vmatprep.mubr.f32.mxu0 0.0
    %565 = vmatmul.mubr.f32.gmra.mxu0 %v109
    %v566 = vpop.f32.mrf.mxu0
    %v567 = vadd.f32 0.0, %v566
    %v568 = vpop.f32.mrf.mxu0
    %v569 = vadd.f32 0.0, %v568
    %570 = vmatprep.mubr.f32.mxu0 0.0
    %571 = vmatmul.mubr.f32.gmra.mxu0 %v112
    %v572 = vpop.f32.mrf.mxu0
    %v573 = vadd.f32 0.0, %v572
    %v574 = vpop.f32.mrf.mxu0
    %v575 = vadd.f32 0.0, %v574
    %576 = vmatprep.mubr.f32.mxu0 0.0
    %577 = vmatmul.mubr.f32.gmra.mxu0 %v115
    %v578 = vpop.f32.mrf.mxu0
    %v579 = vadd.f32 0.0, %v578
    %v580 = vpop.f32.mrf.mxu0
    %v581 = vadd.f32 0.0, %v580
    %582 = vmatprep.mubr.f32.mxu0 0.0
    %583 = vmatmul.mubr.f32.gmra.mxu0 %v118
    %v584 = vpop.f32.mrf.mxu0
    %v585 = vadd.f32 0.0, %v584
    %v586 = vpop.f32.mrf.mxu0
    %v587 = vadd.f32 0.0, %v586
    %588 = vmatprep.mubr.f32.mxu0 0.0
    %589 = vmatmul.mubr.f32.gmra.mxu0 %v121
    %v590 = vpop.f32.mrf.mxu0
    %v591 = vadd.f32 0.0, %v590
    %v592 = vpop.f32.mrf.mxu0
    %v593 = vadd.f32 0.0, %v592
    %594 = vmatprep.mubr.f32.mxu0 0.0
    %595 = vmatmul.mubr.f32.gmra.mxu0 %v124
    %v596 = vpop.f32.mrf.mxu0
    %v597 = vadd.f32 0.0, %v596
    %v598 = vpop.f32.mrf.mxu0
    %v599 = vadd.f32 0.0, %v598
    %600 = vmatprep.mubr.f32.mxu0 0.0
    %601 = vmatmul.mubr.f32.gmra.mxu0 %v127
    %v602 = vpop.f32.mrf.mxu0
    %v603 = vadd.f32 0.0, %v602
    %v604 = vpop.f32.mrf.mxu0
    %v605 = vadd.f32 0.0, %v604
    %606 = vmatprep.mubr.f32.mxu0 0.0
    %607 = vmatmul.mubr.f32.gmra.mxu0 %v130
    %v608 = vpop.f32.mrf.mxu0
    %v609 = vadd.f32 0.0, %v608
    %v610 = vpop.f32.mrf.mxu0
    %v611 = vadd.f32 0.0, %v610
    %612 = vmatprep.mubr.f32.mxu0 0.0
    %613 = vmatmul.mubr.f32.gmra.mxu0 %v133
    %v614 = vpop.f32.mrf.mxu0
    %v615 = vadd.f32 0.0, %v614
    %v616 = vpop.f32.mrf.mxu0
    %v617 = vadd.f32 0.0, %v616
    %618 = vmatprep.mubr.f32.mxu0 0.0
    %619 = vmatmul.mubr.f32.gmra.mxu0 %v136
    %v620 = vpop.f32.mrf.mxu0
    %v621 = vadd.f32 0.0, %v620
    %v622 = vpop.f32.mrf.mxu0
    %v623 = vadd.f32 0.0, %v622
    %624 = vmatprep.mubr.f32.mxu0 0.0
    %625 = vmatmul.mubr.f32.gmra.mxu0 %v139
    %v626 = vpop.f32.mrf.mxu0
    %v627 = vadd.f32 0.0, %v626
    %v628 = vpop.f32.mrf.mxu0
    %v629 = vadd.f32 0.0, %v628
    %630 = vmatprep.mubr.f32.mxu0 0.0
    %631 = vmatmul.mubr.f32.gmra.mxu0 %v142
    %v632 = vpop.f32.mrf.mxu0
    %v633 = vadd.f32 0.0, %v632
    %v634 = vpop.f32.mrf.mxu0
    %v635 = vadd.f32 0.0, %v634
    %636 = vmatprep.mubr.f32.mxu0 0.0
    %637 = vmatmul.mubr.f32.gmra.mxu0 %v145
    %v638 = vpop.f32.mrf.mxu0
    %v639 = vadd.f32 0.0, %v638
    %v640 = vpop.f32.mrf.mxu0
    %v641 = vadd.f32 0.0, %v640
    %642 = vmatprep.mubr.f32.mxu0 0.0
    %643 = vmatmul.mubr.f32.gmra.mxu0 %v148
    %v644 = vpop.f32.mrf.mxu0
    %v645 = vadd.f32 0.0, %v644
    %v646 = vpop.f32.mrf.mxu0
    %v647 = vadd.f32 0.0, %v646
    %648 = vmatprep.mubr.f32.mxu0 0.0
    %649 = vmatmul.mubr.f32.gmra.mxu0 %v151
    %v650 = vpop.f32.mrf.mxu0
    %v651 = vadd.f32 0.0, %v650
    %v652 = vpop.f32.mrf.mxu0
    %v653 = vadd.f32 0.0, %v652
    %654 = vmatprep.mubr.f32.mxu0 0.0
    %655 = vmatmul.mubr.f32.gmra.mxu0 %v154
    %v656 = vpop.f32.mrf.mxu0
    %v657 = vadd.f32 0.0, %v656
    %v658 = vpop.f32.mrf.mxu0
    %v659 = vadd.f32 0.0, %v658
    %660 = vmatprep.mubr.f32.mxu0 0.0
    %661 = vmatmul.mubr.f32.gmra.mxu0 %v157
    %v662 = vpop.f32.mrf.mxu0
    %v663 = vadd.f32 0.0, %v662
    %v664 = vpop.f32.mrf.mxu0
    %v665 = vadd.f32 0.0, %v664
    %666 = vmatprep.mubr.f32.mxu0 0.0
    %667 = vmatmul.mubr.f32.gmra.mxu0 %v160
    %v668 = vpop.f32.mrf.mxu0
    %v669 = vadd.f32 0.0, %v668
    %v670 = vpop.f32.mrf.mxu0
    %v671 = vadd.f32 0.0, %v670
    %672 = vmatprep.mubr.f32.mxu0 0.0
    %673 = vmatmul.mubr.f32.gmra.mxu0 %v163
    %v674 = vpop.f32.mrf.mxu0
    %v675 = vadd.f32 0.0, %v674
    %v676 = vpop.f32.mrf.mxu0
    %v677 = vadd.f32 0.0, %v676
    %678 = vdwg.mxu0
    %v679 = vld [vmem:[#allocation2] sm:$0xff]
    %v680 = vld [vmem:[#allocation2 + $0x8] sm:$0xff]
    %v681 = vld [vmem:[#allocation2 + $0x10] sm:$0xff]
    %v682 = vld [vmem:[#allocation2 + $0x18] sm:$0xff]
    %v683 = vld [vmem:[#allocation2 + $0x20] sm:$0xff]
    %v684 = vld [vmem:[#allocation2 + $0x28] sm:$0xff]
    %v685 = vld [vmem:[#allocation2 + $0x30] sm:$0xff]
    %v686 = vld [vmem:[#allocation2 + $0x38] sm:$0xff]
    %v687 = vld [vmem:[#allocation2 + $0x40] sm:$0xff]
    %v688 = vld [vmem:[#allocation2 + $0x48] sm:$0xff]
    %v689 = vld [vmem:[#allocation2 + $0x50] sm:$0xff]
    %v690 = vld [vmem:[#allocation2 + $0x58] sm:$0xff]
    %v691 = vld [vmem:[#allocation2 + $0x60] sm:$0xff]
    %v692 = vld [vmem:[#allocation2 + $0x68] sm:$0xff]
    %v693 = vld [vmem:[#allocation2 + $0x70] sm:$0xff]
    %v694 = vld [vmem:[#allocation2 + $0x78] sm:$0xff]
    %v695 = vld [vmem:[#allocation2 + $0x80] sm:$0xff]
    %v696 = vld [vmem:[#allocation2 + $0x88] sm:$0xff]
    %v697 = vld [vmem:[#allocation2 + $0x90] sm:$0xff]
    %v698 = vld [vmem:[#allocation2 + $0x98] sm:$0xff]
    %v699 = vld [vmem:[#allocation2 + $0xa0] sm:$0xff]
    %v700 = vld [vmem:[#allocation2 + $0xa8] sm:$0xff]
    %v701 = vld [vmem:[#allocation2 + $0xb0] sm:$0xff]
    %v702 = vld [vmem:[#allocation2 + $0xb8] sm:$0xff]
    %v703 = vld [vmem:[#allocation2 + $0xc0] sm:$0xff]
    %v704 = vld [vmem:[#allocation2 + $0xc8] sm:$0xff]
    %v705 = vld [vmem:[#allocation2 + $0xd0] sm:$0xff]
    %v706 = vld [vmem:[#allocation2 + $0xd8] sm:$0xff]
    %v707 = vld [vmem:[#allocation2 + $0xe0] sm:$0xff]
    %v708 = vld [vmem:[#allocation2 + $0xe8] sm:$0xff]
    %v709 = vld [vmem:[#allocation2 + $0xf0] sm:$0xff]
    %v710 = vld [vmem:[#allocation2 + $0xf8] sm:$0xff]
    %v711 = vld [vmem:[#allocation2 + $0x100] sm:$0xff]
    %v712 = vld [vmem:[#allocation2 + $0x108] sm:$0xff]
    %v713 = vld [vmem:[#allocation2 + $0x110] sm:$0xff]
    %v714 = vld [vmem:[#allocation2 + $0x118] sm:$0xff]
    %v715 = vld [vmem:[#allocation2 + $0x120] sm:$0xff]
    %v716 = vld [vmem:[#allocation2 + $0x128] sm:$0xff]
    %v717 = vld [vmem:[#allocation2 + $0x130] sm:$0xff]
    %v718 = vld [vmem:[#allocation2 + $0x138] sm:$0xff]
    %v719 = vld [vmem:[#allocation2 + $0x140] sm:$0xff]
    %v720 = vld [vmem:[#allocation2 + $0x148] sm:$0xff]
    %v721 = vld [vmem:[#allocation2 + $0x150] sm:$0xff]
    %v722 = vld [vmem:[#allocation2 + $0x158] sm:$0xff]
    %v723 = vld [vmem:[#allocation2 + $0x160] sm:$0xff]
    %v724 = vld [vmem:[#allocation2 + $0x168] sm:$0xff]
    %v725 = vld [vmem:[#allocation2 + $0x170] sm:$0xff]
    %v726 = vld [vmem:[#allocation2 + $0x178] sm:$0xff]
    %v727 = vld [vmem:[#allocation2 + $0x180] sm:$0xff]
    %v728 = vld [vmem:[#allocation2 + $0x188] sm:$0xff]
    %v729 = vld [vmem:[#allocation2 + $0x190] sm:$0xff]
    %v730 = vld [vmem:[#allocation2 + $0x198] sm:$0xff]
    %v731 = vld [vmem:[#allocation2 + $0x1a0] sm:$0xff]
    %v732 = vld [vmem:[#allocation2 + $0x1a8] sm:$0xff]
    %v733 = vld [vmem:[#allocation2 + $0x1b0] sm:$0xff]
    %v734 = vld [vmem:[#allocation2 + $0x1b8] sm:$0xff]
    %v735 = vld [vmem:[#allocation2 + $0x1c0] sm:$0xff]
    %v736 = vld [vmem:[#allocation2 + $0x1c8] sm:$0xff]
    %v737 = vld [vmem:[#allocation2 + $0x1d0] sm:$0xff]
    %v738 = vld [vmem:[#allocation2 + $0x1d8] sm:$0xff]
    %v739 = vld [vmem:[#allocation2 + $0x1e0] sm:$0xff]
    %v740 = vld [vmem:[#allocation2 + $0x1e8] sm:$0xff]
    %v741 = vld [vmem:[#allocation2 + $0x1f0] sm:$0xff]
    %v742 = vld [vmem:[#allocation2 + $0x1f8] sm:$0xff]
    %v743 = vld [vmem:[#allocation2 + $0x200] sm:$0xff]
    %v744 = vld [vmem:[#allocation2 + $0x208] sm:$0xff]
    %v745 = vld [vmem:[#allocation2 + $0x210] sm:$0xff]
    %v746 = vld [vmem:[#allocation2 + $0x218] sm:$0xff]
    %v747 = vld [vmem:[#allocation2 + $0x220] sm:$0xff]
    %v748 = vld [vmem:[#allocation2 + $0x228] sm:$0xff]
    %v749 = vld [vmem:[#allocation2 + $0x230] sm:$0xff]
    %v750 = vld [vmem:[#allocation2 + $0x238] sm:$0xff]
    %v751 = vld [vmem:[#allocation2 + $0x240] sm:$0xff]
    %v752 = vld [vmem:[#allocation2 + $0x248] sm:$0xff]
    %v753 = vld [vmem:[#allocation2 + $0x250] sm:$0xff]
    %v754 = vld [vmem:[#allocation2 + $0x258] sm:$0xff]
    %v755 = vld [vmem:[#allocation2 + $0x260] sm:$0xff]
    %v756 = vld [vmem:[#allocation2 + $0x268] sm:$0xff]
    %v757 = vld [vmem:[#allocation2 + $0x270] sm:$0xff]
    %v758 = vld [vmem:[#allocation2 + $0x278] sm:$0xff]
    %v759 = vld [vmem:[#allocation2 + $0x280] sm:$0xff]
    %v760 = vld [vmem:[#allocation2 + $0x288] sm:$0xff]
    %v761 = vld [vmem:[#allocation2 + $0x290] sm:$0xff]
    %v762 = vld [vmem:[#allocation2 + $0x298] sm:$0xff]
    %v763 = vld [vmem:[#allocation2 + $0x2a0] sm:$0xff]
    %v764 = vld [vmem:[#allocation2 + $0x2a8] sm:$0xff]
    %v765 = vld [vmem:[#allocation2 + $0x2b0] sm:$0xff]
    %v766 = vld [vmem:[#allocation2 + $0x2b8] sm:$0xff]
    %v767 = vld [vmem:[#allocation2 + $0x2c0] sm:$0xff]
    %v768 = vld [vmem:[#allocation2 + $0x2c8] sm:$0xff]
    %v769 = vld [vmem:[#allocation2 + $0x2d0] sm:$0xff]
    %v770 = vld [vmem:[#allocation2 + $0x2d8] sm:$0xff]
    %v771 = vld [vmem:[#allocation2 + $0x2e0] sm:$0xff]
    %v772 = vld [vmem:[#allocation2 + $0x2e8] sm:$0xff]
    %v773 = vld [vmem:[#allocation2 + $0x2f0] sm:$0xff]
    %v774 = vld [vmem:[#allocation2 + $0x2f8] sm:$0xff]
    %v775 = vld [vmem:[#allocation2 + $0x300] sm:$0xff]
    %v776 = vld [vmem:[#allocation2 + $0x308] sm:$0xff]
    %v777 = vld [vmem:[#allocation2 + $0x310] sm:$0xff]
    %v778 = vld [vmem:[#allocation2 + $0x318] sm:$0xff]
    %v779 = vld [vmem:[#allocation2 + $0x320] sm:$0xff]
    %v780 = vld [vmem:[#allocation2 + $0x328] sm:$0xff]
    %v781 = vld [vmem:[#allocation2 + $0x330] sm:$0xff]
    %v782 = vld [vmem:[#allocation2 + $0x338] sm:$0xff]
    %v783 = vld [vmem:[#allocation2 + $0x340] sm:$0xff]
    %v784 = vld [vmem:[#allocation2 + $0x348] sm:$0xff]
    %v785 = vld [vmem:[#allocation2 + $0x350] sm:$0xff]
    %v786 = vld [vmem:[#allocation2 + $0x358] sm:$0xff]
    %v787 = vld [vmem:[#allocation2 + $0x360] sm:$0xff]
    %v788 = vld [vmem:[#allocation2 + $0x368] sm:$0xff]
    %v789 = vld [vmem:[#allocation2 + $0x370] sm:$0xff]
    %v790 = vld [vmem:[#allocation2 + $0x378] sm:$0xff]
    %v791 = vld [vmem:[#allocation2 + $0x380] sm:$0xff]
    %v792 = vld [vmem:[#allocation2 + $0x388] sm:$0xff]
    %v793 = vld [vmem:[#allocation2 + $0x390] sm:$0xff]
    %v794 = vld [vmem:[#allocation2 + $0x398] sm:$0xff]
    %v795 = vld [vmem:[#allocation2 + $0x3a0] sm:$0xff]
    %v796 = vld [vmem:[#allocation2 + $0x3a8] sm:$0xff]
    %v797 = vld [vmem:[#allocation2 + $0x3b0] sm:$0xff]
    %v798 = vld [vmem:[#allocation2 + $0x3b8] sm:$0xff]
    %v799 = vld [vmem:[#allocation2 + $0x3c0] sm:$0xff]
    %v800 = vld [vmem:[#allocation2 + $0x3c8] sm:$0xff]
    %v801 = vld [vmem:[#allocation2 + $0x3d0] sm:$0xff]
    %v802 = vld [vmem:[#allocation2 + $0x3d8] sm:$0xff]
    %v803 = vld [vmem:[#allocation2 + $0x3e0] sm:$0xff]
    %v804 = vld [vmem:[#allocation2 + $0x3e8] sm:$0xff]
    %v805 = vld [vmem:[#allocation2 + $0x3f0] sm:$0xff]
    %v806 = vld [vmem:[#allocation2 + $0x3f8] sm:$0xff]
    %v807 = vmul.f32 %v232, 2.0
    %v808 = vmul.f32 %v234, 2.0
    %v809 = vmul.f32 %v489, 2.0
    %v810 = vmul.f32 %v491, 2.0
    %v811 = vmul.f32 %v238, 2.0
    %v812 = vmul.f32 %v240, 2.0
    %v813 = vmul.f32 %v495, 2.0
    %v814 = vmul.f32 %v497, 2.0
    %v815 = vmul.f32 %v244, 2.0
    %v816 = vmul.f32 %v246, 2.0
    %v817 = vmul.f32 %v501, 2.0
    %v818 = vmul.f32 %v503, 2.0
    %v819 = vmul.f32 %v250, 2.0
    %v820 = vmul.f32 %v252, 2.0
    %v821 = vmul.f32 %v507, 2.0
    %v822 = vmul.f32 %v509, 2.0
    %v823 = vmul.f32 %v256, 2.0
    %v824 = vmul.f32 %v258, 2.0
    %v825 = vmul.f32 %v513, 2.0
    %v826 = vmul.f32 %v515, 2.0
    %v827 = vmul.f32 %v262, 2.0
    %v828 = vmul.f32 %v264, 2.0
    %v829 = vmul.f32 %v519, 2.0
    %v830 = vmul.f32 %v521, 2.0
    %v831 = vmul.f32 %v268, 2.0
    %v832 = vmul.f32 %v270, 2.0
    %v833 = vmul.f32 %v525, 2.0
    %v834 = vmul.f32 %v527, 2.0
    %v835 = vmul.f32 %v274, 2.0
    %v836 = vmul.f32 %v276, 2.0
    %v837 = vmul.f32 %v531, 2.0
    %v838 = vmul.f32 %v533, 2.0
    %v839 = vmul.f32 %v280, 2.0
    %v840 = vmul.f32 %v282, 2.0
    %v841 = vmul.f32 %v537, 2.0
    %v842 = vmul.f32 %v539, 2.0
    %v843 = vmul.f32 %v286, 2.0
    %v844 = vmul.f32 %v288, 2.0
    %v845 = vmul.f32 %v543, 2.0
    %v846 = vmul.f32 %v545, 2.0
    %v847 = vmul.f32 %v292, 2.0
    %v848 = vmul.f32 %v294, 2.0
    %v849 = vmul.f32 %v549, 2.0
    %v850 = vmul.f32 %v551, 2.0
    %v851 = vmul.f32 %v298, 2.0
    %v852 = vmul.f32 %v300, 2.0
    %v853 = vmul.f32 %v555, 2.0
    %v854 = vmul.f32 %v557, 2.0
    %v855 = vmul.f32 %v304, 2.0
    %v856 = vmul.f32 %v306, 2.0
    %v857 = vmul.f32 %v561, 2.0
    %v858 = vmul.f32 %v563, 2.0
    %v859 = vmul.f32 %v310, 2.0
    %v860 = vmul.f32 %v312, 2.0
    %v861 = vmul.f32 %v567, 2.0
    %v862 = vmul.f32 %v569, 2.0
    %v863 = vmul.f32 %v316, 2.0
    %v864 = vmul.f32 %v318, 2.0
    %v865 = vmul.f32 %v573, 2.0
    %v866 = vmul.f32 %v575, 2.0
    %v867 = vmul.f32 %v322, 2.0
    %v868 = vmul.f32 %v324, 2.0
    %v869 = vmul.f32 %v579, 2.0
    %v870 = vmul.f32 %v581, 2.0
    %v871 = vmul.f32 %v328, 2.0
    %v872 = vmul.f32 %v330, 2.0
    %v873 = vmul.f32 %v585, 2.0
    %v874 = vmul.f32 %v587, 2.0
    %v875 = vmul.f32 %v334, 2.0
    %v876 = vmul.f32 %v336, 2.0
    %v877 = vmul.f32 %v591, 2.0
    %v878 = vmul.f32 %v593, 2.0
    %v879 = vmul.f32 %v340, 2.0
    %v880 = vmul.f32 %v342, 2.0
    %v881 = vmul.f32 %v597, 2.0
    %v882 = vmul.f32 %v599, 2.0
    %v883 = vmul.f32 %v346, 2.0
    %v884 = vmul.f32 %v348, 2.0
    %v885 = vmul.f32 %v603, 2.0
    %v886 = vmul.f32 %v605, 2.0
    %v887 = vmul.f32 %v352, 2.0
    %v888 = vmul.f32 %v354, 2.0
    %v889 = vmul.f32 %v609, 2.0
    %v890 = vmul.f32 %v611, 2.0
    %v891 = vmul.f32 %v358, 2.0
    %v892 = vmul.f32 %v360, 2.0
    %v893 = vmul.f32 %v615, 2.0
    %v894 = vmul.f32 %v617, 2.0
    %v895 = vmul.f32 %v364, 2.0
    %v896 = vmul.f32 %v366, 2.0
    %v897 = vmul.f32 %v621, 2.0
    %v898 = vmul.f32 %v623, 2.0
    %v899 = vmul.f32 %v370, 2.0
    %v900 = vmul.f32 %v372, 2.0
    %v901 = vmul.f32 %v627, 2.0
    %v902 = vmul.f32 %v629, 2.0
    %v903 = vmul.f32 %v376, 2.0
    %v904 = vmul.f32 %v378, 2.0
    %v905 = vmul.f32 %v633, 2.0
    %v906 = vmul.f32 %v635, 2.0
    %v907 = vmul.f32 %v382, 2.0
    %v908 = vmul.f32 %v384, 2.0
    %v909 = vmul.f32 %v639, 2.0
    %v910 = vmul.f32 %v641, 2.0
    %v911 = vmul.f32 %v388, 2.0
    %v912 = vmul.f32 %v390, 2.0
    %v913 = vmul.f32 %v645, 2.0
    %v914 = vmul.f32 %v647, 2.0
    %v915 = vmul.f32 %v394, 2.0
    %v916 = vmul.f32 %v396, 2.0
    %v917 = vmul.f32 %v651, 2.0
    %v918 = vmul.f32 %v653, 2.0
    %v919 = vmul.f32 %v400, 2.0
    %v920 = vmul.f32 %v402, 2.0
    %v921 = vmul.f32 %v657, 2.0
    %v922 = vmul.f32 %v659, 2.0
    %v923 = vmul.f32 %v406, 2.0
    %v924 = vmul.f32 %v408, 2.0
    %v925 = vmul.f32 %v663, 2.0
    %v926 = vmul.f32 %v665, 2.0
    %v927 = vmul.f32 %v412, 2.0
    %v928 = vmul.f32 %v414, 2.0
    %v929 = vmul.f32 %v669, 2.0
    %v930 = vmul.f32 %v671, 2.0
    %v931 = vmul.f32 %v418, 2.0
    %v932 = vmul.f32 %v420, 2.0
    %v933 = vmul.f32 %v675, 2.0
    %v934 = vmul.f32 %v677, 2.0
    %v935 = vadd.f32 %v679, %v807
    %v936 = vadd.f32 %v680, %v808
    %v937 = vadd.f32 %v681, %v809
    %v938 = vadd.f32 %v682, %v810
    %v939 = vadd.f32 %v683, %v811
    %v940 = vadd.f32 %v684, %v812
    %v941 = vadd.f32 %v685, %v813
    %v942 = vadd.f32 %v686, %v814
    %v943 = vadd.f32 %v687, %v815
    %v944 = vadd.f32 %v688, %v816
    %v945 = vadd.f32 %v689, %v817
    %v946 = vadd.f32 %v690, %v818
    %v947 = vadd.f32 %v691, %v819
    %v948 = vadd.f32 %v692, %v820
    %v949 = vadd.f32 %v693, %v821
    %v950 = vadd.f32 %v694, %v822
    %v951 = vadd.f32 %v695, %v823
    %v952 = vadd.f32 %v696, %v824
    %v953 = vadd.f32 %v697, %v825
    %v954 = vadd.f32 %v698, %v826
    %v955 = vadd.f32 %v699, %v827
    %v956 = vadd.f32 %v700, %v828
    %v957 = vadd.f32 %v701, %v829
    %v958 = vadd.f32 %v702, %v830
    %v959 = vadd.f32 %v703, %v831
    %v960 = vadd.f32 %v704, %v832
    %v961 = vadd.f32 %v705, %v833
    %v962 = vadd.f32 %v706, %v834
    %v963 = vadd.f32 %v707, %v835
    %v964 = vadd.f32 %v708, %v836
    %v965 = vadd.f32 %v709, %v837
    %v966 = vadd.f32 %v710, %v838
    %v967 = vadd.f32 %v711, %v839
    %v968 = vadd.f32 %v712, %v840
    %v969 = vadd.f32 %v713, %v841
    %v970 = vadd.f32 %v714, %v842
    %v971 = vadd.f32 %v715, %v843
    %v972 = vadd.f32 %v716, %v844
    %v973 = vadd.f32 %v717, %v845
    %v974 = vadd.f32 %v718, %v846
    %v975 = vadd.f32 %v719, %v847
    %v976 = vadd.f32 %v720, %v848
    %v977 = vadd.f32 %v721, %v849
    %v978 = vadd.f32 %v722, %v850
    %v979 = vadd.f32 %v723, %v851
    %v980 = vadd.f32 %v724, %v852
    %v981 = vadd.f32 %v725, %v853
    %v982 = vadd.f32 %v726, %v854
    %v983 = vadd.f32 %v727, %v855
    %v984 = vadd.f32 %v728, %v856
    %v985 = vadd.f32 %v729, %v857
    %v986 = vadd.f32 %v730, %v858
    %v987 = vadd.f32 %v731, %v859
    %v988 = vadd.f32 %v732, %v860
    %v989 = vadd.f32 %v733, %v861
    %v990 = vadd.f32 %v734, %v862
    %v991 = vadd.f32 %v735, %v863
    %v992 = vadd.f32 %v736, %v864
    %v993 = vadd.f32 %v737, %v865
    %v994 = vadd.f32 %v738, %v866
    %v995 = vadd.f32 %v739, %v867
    %v996 = vadd.f32 %v740, %v868
    %v997 = vadd.f32 %v741, %v869
    %v998 = vadd.f32 %v742, %v870
    %v999 = vadd.f32 %v743, %v871
    %v1000 = vadd.f32 %v744, %v872
    %v1001 = vadd.f32 %v745, %v873
    %v1002 = vadd.f32 %v746, %v874
    %v1003 = vadd.f32 %v747, %v875
    %v1004 = vadd.f32 %v748, %v876
    %v1005 = vadd.f32 %v749, %v877
    %v1006 = vadd.f32 %v750, %v878
    %v1007 = vadd.f32 %v751, %v879
    %v1008 = vadd.f32 %v752, %v880
    %v1009 = vadd.f32 %v753, %v881
    %v1010 = vadd.f32 %v754, %v882
    %v1011 = vadd.f32 %v755, %v883
    %v1012 = vadd.f32 %v756, %v884
    %v1013 = vadd.f32 %v757, %v885
    %v1014 = vadd.f32 %v758, %v886
    %v1015 = vadd.f32 %v759, %v887
    %v1016 = vadd.f32 %v760, %v888
    %v1017 = vadd.f32 %v761, %v889
    %v1018 = vadd.f32 %v762, %v890
    %v1019 = vadd.f32 %v763, %v891
    %v1020 = vadd.f32 %v764, %v892
    %v1021 = vadd.f32 %v765, %v893
    %v1022 = vadd.f32 %v766, %v894
    %v1023 = vadd.f32 %v767, %v895
    %v1024 = vadd.f32 %v768, %v896
    %v1025 = vadd.f32 %v769, %v897
    %v1026 = vadd.f32 %v770, %v898
    %v1027 = vadd.f32 %v771, %v899
    %v1028 = vadd.f32 %v772, %v900
    %v1029 = vadd.f32 %v773, %v901
    %v1030 = vadd.f32 %v774, %v902
    %v1031 = vadd.f32 %v775, %v903
    %v1032 = vadd.f32 %v776, %v904
    %v1033 = vadd.f32 %v777, %v905
    %v1034 = vadd.f32 %v778, %v906
    %v1035 = vadd.f32 %v779, %v907
    %v1036 = vadd.f32 %v780, %v908
    %v1037 = vadd.f32 %v781, %v909
    %v1038 = vadd.f32 %v782, %v910
    %v1039 = vadd.f32 %v783, %v911
    %v1040 = vadd.f32 %v784, %v912
    %v1041 = vadd.f32 %v785, %v913
    %v1042 = vadd.f32 %v786, %v914
    %v1043 = vadd.f32 %v787, %v915
    %v1044 = vadd.f32 %v788, %v916
    %v1045 = vadd.f32 %v789, %v917
    %v1046 = vadd.f32 %v790, %v918
    %v1047 = vadd.f32 %v791, %v919
    %v1048 = vadd.f32 %v792, %v920
    %v1049 = vadd.f32 %v793, %v921
    %v1050 = vadd.f32 %v794, %v922
    %v1051 = vadd.f32 %v795, %v923
    %v1052 = vadd.f32 %v796, %v924
    %v1053 = vadd.f32 %v797, %v925
    %v1054 = vadd.f32 %v798, %v926
    %v1055 = vadd.f32 %v799, %v927
    %v1056 = vadd.f32 %v800, %v928
    %v1057 = vadd.f32 %v801, %v929
    %v1058 = vadd.f32 %v802, %v930
    %v1059 = vadd.f32 %v803, %v931
    %v1060 = vadd.f32 %v804, %v932
    %v1061 = vadd.f32 %v805, %v933
    %v1062 = vadd.f32 %v806, %v934
    %1063 = vst [vmem:[#allocation5] sm:$0xff] %v935
    %1064 = vst [vmem:[#allocation5 + $0x8] sm:$0xff] %v936
    %1065 = vst [vmem:[#allocation5 + $0x10] sm:$0xff] %v937
    %1066 = vst [vmem:[#allocation5 + $0x18] sm:$0xff] %v938
    %1067 = vst [vmem:[#allocation5 + $0x20] sm:$0xff] %v939
    %1068 = vst [vmem:[#allocation5 + $0x28] sm:$0xff] %v940
    %1069 = vst [vmem:[#allocation5 + $0x30] sm:$0xff] %v941
    %1070 = vst [vmem:[#allocation5 + $0x38] sm:$0xff] %v942
    %1071 = vst [vmem:[#allocation5 + $0x40] sm:$0xff] %v943
    %1072 = vst [vmem:[#allocation5 + $0x48] sm:$0xff] %v944
    %1073 = vst [vmem:[#allocation5 + $0x50] sm:$0xff] %v945
    %1074 = vst [vmem:[#allocation5 + $0x58] sm:$0xff] %v946
    %1075 = vst [vmem:[#allocation5 + $0x60] sm:$0xff] %v947
    %1076 = vst [vmem:[#allocation5 + $0x68] sm:$0xff] %v948
    %1077 = vst [vmem:[#allocation5 + $0x70] sm:$0xff] %v949
    %1078 = vst [vmem:[#allocation5 + $0x78] sm:$0xff] %v950
    %1079 = vst [vmem:[#allocation5 + $0x80] sm:$0xff] %v951
    %1080 = vst [vmem:[#allocation5 + $0x88] sm:$0xff] %v952
    %1081 = vst [vmem:[#allocation5 + $0x90] sm:$0xff] %v953
    %1082 = vst [vmem:[#allocation5 + $0x98] sm:$0xff] %v954
    %1083 = vst [vmem:[#allocation5 + $0xa0] sm:$0xff] %v955
    %1084 = vst [vmem:[#allocation5 + $0xa8] sm:$0xff] %v956
    %1085 = vst [vmem:[#allocation5 + $0xb0] sm:$0xff] %v957
    %1086 = vst [vmem:[#allocation5 + $0xb8] sm:$0xff] %v958
    %1087 = vst [vmem:[#allocation5 + $0xc0] sm:$0xff] %v959
    %1088 = vst [vmem:[#allocation5 + $0xc8] sm:$0xff] %v960
    %1089 = vst [vmem:[#allocation5 + $0xd0] sm:$0xff] %v961
    %1090 = vst [vmem:[#allocation5 + $0xd8] sm:$0xff] %v962
    %1091 = vst [vmem:[#allocation5 + $0xe0] sm:$0xff] %v963
    %1092 = vst [vmem:[#allocation5 + $0xe8] sm:$0xff] %v964
    %1093 = vst [vmem:[#allocation5 + $0xf0] sm:$0xff] %v965
    %1094 = vst [vmem:[#allocation5 + $0xf8] sm:$0xff] %v966
    %1095 = vst [vmem:[#allocation5 + $0x100] sm:$0xff] %v967
    %1096 = vst [vmem:[#allocation5 + $0x108] sm:$0xff] %v968
    %1097 = vst [vmem:[#allocation5 + $0x110] sm:$0xff] %v969
    %1098 = vst [vmem:[#allocation5 + $0x118] sm:$0xff] %v970
    %1099 = vst [vmem:[#allocation5 + $0x120] sm:$0xff] %v971
    %1100 = vst [vmem:[#allocation5 + $0x128] sm:$0xff] %v972
    %1101 = vst [vmem:[#allocation5 + $0x130] sm:$0xff] %v973
    %1102 = vst [vmem:[#allocation5 + $0x138] sm:$0xff] %v974
    %1103 = vst [vmem:[#allocation5 + $0x140] sm:$0xff] %v975
    %1104 = vst [vmem:[#allocation5 + $0x148] sm:$0xff] %v976
    %1105 = vst [vmem:[#allocation5 + $0x150] sm:$0xff] %v977
    %1106 = vst [vmem:[#allocation5 + $0x158] sm:$0xff] %v978
    %1107 = vst [vmem:[#allocation5 + $0x160] sm:$0xff] %v979
    %1108 = vst [vmem:[#allocation5 + $0x168] sm:$0xff] %v980
    %1109 = vst [vmem:[#allocation5 + $0x170] sm:$0xff] %v981
    %1110 = vst [vmem:[#allocation5 + $0x178] sm:$0xff] %v982
    %1111 = vst [vmem:[#allocation5 + $0x180] sm:$0xff] %v983
    %1112 = vst [vmem:[#allocation5 + $0x188] sm:$0xff] %v984
    %1113 = vst [vmem:[#allocation5 + $0x190] sm:$0xff] %v985
    %1114 = vst [vmem:[#allocation5 + $0x198] sm:$0xff] %v986
    %1115 = vst [vmem:[#allocation5 + $0x1a0] sm:$0xff] %v987
    %1116 = vst [vmem:[#allocation5 + $0x1a8] sm:$0xff] %v988
    %1117 = vst [vmem:[#allocation5 + $0x1b0] sm:$0xff] %v989
    %1118 = vst [vmem:[#allocation5 + $0x1b8] sm:$0xff] %v990
    %1119 = vst [vmem:[#allocation5 + $0x1c0] sm:$0xff] %v991
    %1120 = vst [vmem:[#allocation5 + $0x1c8] sm:$0xff] %v992
    %1121 = vst [vmem:[#allocation5 + $0x1d0] sm:$0xff] %v993
    %1122 = vst [vmem:[#allocation5 + $0x1d8] sm:$0xff] %v994
    %1123 = vst [vmem:[#allocation5 + $0x1e0] sm:$0xff] %v995
    %1124 = vst [vmem:[#allocation5 + $0x1e8] sm:$0xff] %v996
    %1125 = vst [vmem:[#allocation5 + $0x1f0] sm:$0xff] %v997
    %1126 = vst [vmem:[#allocation5 + $0x1f8] sm:$0xff] %v998
    %1127 = vst [vmem:[#allocation5 + $0x200] sm:$0xff] %v999
    %1128 = vst [vmem:[#allocation5 + $0x208] sm:$0xff] %v1000
    %1129 = vst [vmem:[#allocation5 + $0x210] sm:$0xff] %v1001
    %1130 = vst [vmem:[#allocation5 + $0x218] sm:$0xff] %v1002
    %1131 = vst [vmem:[#allocation5 + $0x220] sm:$0xff] %v1003
    %1132 = vst [vmem:[#allocation5 + $0x228] sm:$0xff] %v1004
    %1133 = vst [vmem:[#allocation5 + $0x230] sm:$0xff] %v1005
    %1134 = vst [vmem:[#allocation5 + $0x238] sm:$0xff] %v1006
    %1135 = vst [vmem:[#allocation5 + $0x240] sm:$0xff] %v1007
    %1136 = vst [vmem:[#allocation5 + $0x248] sm:$0xff] %v1008
    %1137 = vst [vmem:[#allocation5 + $0x250] sm:$0xff] %v1009
    %1138 = vst [vmem:[#allocation5 + $0x258] sm:$0xff] %v1010
    %1139 = vst [vmem:[#allocation5 + $0x260] sm:$0xff] %v1011
    %1140 = vst [vmem:[#allocation5 + $0x268] sm:$0xff] %v1012
    %1141 = vst [vmem:[#allocation5 + $0x270] sm:$0xff] %v1013
    %1142 = vst [vmem:[#allocation5 + $0x278] sm:$0xff] %v1014
    %1143 = vst [vmem:[#allocation5 + $0x280] sm:$0xff] %v1015
    %1144 = vst [vmem:[#allocation5 + $0x288] sm:$0xff] %v1016
    %1145 = vst [vmem:[#allocation5 + $0x290] sm:$0xff] %v1017
    %1146 = vst [vmem:[#allocation5 + $0x298] sm:$0xff] %v1018
    %1147 = vst [vmem:[#allocation5 + $0x2a0] sm:$0xff] %v1019
    %1148 = vst [vmem:[#allocation5 + $0x2a8] sm:$0xff] %v1020
    %1149 = vst [vmem:[#allocation5 + $0x2b0] sm:$0xff] %v1021
    %1150 = vst [vmem:[#allocation5 + $0x2b8] sm:$0xff] %v1022
    %1151 = vst [vmem:[#allocation5 + $0x2c0] sm:$0xff] %v1023
    %1152 = vst [vmem:[#allocation5 + $0x2c8] sm:$0xff] %v1024
    %1153 = vst [vmem:[#allocation5 + $0x2d0] sm:$0xff] %v1025
    %1154 = vst [vmem:[#allocation5 + $0x2d8] sm:$0xff] %v1026
    %1155 = vst [vmem:[#allocation5 + $0x2e0] sm:$0xff] %v1027
    %1156 = vst [vmem:[#allocation5 + $0x2e8] sm:$0xff] %v1028
    %1157 = vst [vmem:[#allocation5 + $0x2f0] sm:$0xff] %v1029
    %1158 = vst [vmem:[#allocation5 + $0x2f8] sm:$0xff] %v1030
    %1159 = vst [vmem:[#allocation5 + $0x300] sm:$0xff] %v1031
    %1160 = vst [vmem:[#allocation5 + $0x308] sm:$0xff] %v1032
    %1161 = vst [vmem:[#allocation5 + $0x310] sm:$0xff] %v1033
    %1162 = vst [vmem:[#allocation5 + $0x318] sm:$0xff] %v1034
    %1163 = vst [vmem:[#allocation5 + $0x320] sm:$0xff] %v1035
    %1164 = vst [vmem:[#allocation5 + $0x328] sm:$0xff] %v1036
    %1165 = vst [vmem:[#allocation5 + $0x330] sm:$0xff] %v1037
    %1166 = vst [vmem:[#allocation5 + $0x338] sm:$0xff] %v1038
    %1167 = vst [vmem:[#allocation5 + $0x340] sm:$0xff] %v1039
    %1168 = vst [vmem:[#allocation5 + $0x348] sm:$0xff] %v1040
    %1169 = vst [vmem:[#allocation5 + $0x350] sm:$0xff] %v1041
    %1170 = vst [vmem:[#allocation5 + $0x358] sm:$0xff] %v1042
    %1171 = vst [vmem:[#allocation5 + $0x360] sm:$0xff] %v1043
    %1172 = vst [vmem:[#allocation5 + $0x368] sm:$0xff] %v1044
    %1173 = vst [vmem:[#allocation5 + $0x370] sm:$0xff] %v1045
    %1174 = vst [vmem:[#allocation5 + $0x378] sm:$0xff] %v1046
    %1175 = vst [vmem:[#allocation5 + $0x380] sm:$0xff] %v1047
    %1176 = vst [vmem:[#allocation5 + $0x388] sm:$0xff] %v1048
    %1177 = vst [vmem:[#allocation5 + $0x390] sm:$0xff] %v1049
    %1178 = vst [vmem:[#allocation5 + $0x398] sm:$0xff] %v1050
    %1179 = vst [vmem:[#allocation5 + $0x3a0] sm:$0xff] %v1051
    %1180 = vst [vmem:[#allocation5 + $0x3a8] sm:$0xff] %v1052
    %1181 = vst [vmem:[#allocation5 + $0x3b0] sm:$0xff] %v1053
    %1182 = vst [vmem:[#allocation5 + $0x3b8] sm:$0xff] %v1054
    %1183 = vst [vmem:[#allocation5 + $0x3c0] sm:$0xff] %v1055
    %1184 = vst [vmem:[#allocation5 + $0x3c8] sm:$0xff] %v1056
    %1185 = vst [vmem:[#allocation5 + $0x3d0] sm:$0xff] %v1057
    %1186 = vst [vmem:[#allocation5 + $0x3d8] sm:$0xff] %v1058
    %1187 = vst [vmem:[#allocation5 + $0x3e0] sm:$0xff] %v1059
    %1188 = vst [vmem:[#allocation5 + $0x3e8] sm:$0xff] %v1060
    %1189 = vst [vmem:[#allocation5 + $0x3f0] sm:$0xff] %v1061
    %1190 = vst [vmem:[#allocation5 + $0x3f8] sm:$0xff] %v1062
    // Predicated region
    $region18: #{tpu_custom_call.1} parent=1 // pred_check
      _
    $region19: #{tpu_custom_call.1} parent=1 // pred_check_branch
      %1192 = sbr.rel (0) target = $region21
    $region20: #{tpu_custom_call.1} parent=1 // pred_region
      %s1194 = ssub.s32 16384, 16384
      %1195 = vsyncadd [#allocation4], %s1194
      %s1196 = sshll.u32 [#allocation5], 4
      %s1197 = int_to_ptr.vmem [resolvable:$true] %s1196
      %1202 = dma.vmem_to_hbm [thread:$0]  %s1197, 16384, %s3, [#allocation4], 512, 512, 32
    $region21: #{tpu_custom_call.1} parent=1 // pred_fallthru
      _
    // Predicated region
    $region22: #{tpu_custom_call.1} parent=1 // pred_check
      _
    $region23: #{tpu_custom_call.1} parent=1 // pred_check_branch
      %1204 = sbr.rel (0) target = $region25
    $region24: #{tpu_custom_call.1} parent=1 // pred_region
      %1205 = dma.done [#allocation4], 16384
    $region25: #{tpu_custom_call.1} parent=1 // pred_fallthru
      _
    %1206 = vsyncpa [#allocation3], 1
    %1207 = vsyncpa [#allocation4], 1

</llo_original>
